<compile_context>
chip_gen: v7x
topology: tpu7x:2x2x1
jax: 0.10.0
libtpu: 0.0.40
codegen_flags: <defaults>
</compile_context>

<pallas_src>
import math

import jax
import jax.numpy as jnp
from jax.experimental import pallas as pl
from jax.experimental.pallas import tpu as pltpu

_LANE = 128
_SUBLANE = 8


def _round_up(x, m):
    return ((x + m - 1) // m) * m


# ----------------------------------------------------------------------------
# Tiling helpers
# ----------------------------------------------------------------------------
def _pick_tile_rows(rows, row_bytes, *, target_bytes=3 << 20, min_steps=8):
    """Tile-row chooser for a streaming kernel.

    - ~target_bytes per block (2-4 MiB band: the streaming-add roofline
      saturates there on v5e/v6e and it double-buffers inside v7x's scoped VMEM)
    - multiple of 8 sublanes
    - aims for >= min_steps grid steps (>= 4 per v7x TensorCore) when the
      problem is big enough, so each core still double-buffers
    - never requires an exact divisor: the caller uses pl.cdiv and Pallas
      masks the ragged last block.
    """
    if rows <= _SUBLANE:
        return rows
    tile = max(_SUBLANE, (target_bytes // max(row_bytes, 1)) // _SUBLANE * _SUBLANE)
    if rows >= min_steps * _SUBLANE:
        per_step = _round_up(-(-rows // min_steps), _SUBLANE)  # ceil, 8-aligned
        tile = min(tile, per_step)
    if tile >= rows:
        return rows  # single full-extent block (always layout-legal)
    return tile


def _vmem_limit(tile_bytes, n_streams, extra_bytes=0):
    """Double-buffered streams + resident extras + compiler headroom."""
    need = 2 * n_streams * tile_bytes + extra_bytes + (4 << 20)
    return int(min(max(need, 8 << 20), 32 << 20))


def _lane_dense_layout(value, mean_row):
    """Return (val2, mean_row2, rows, W, pad) with W a multiple of 128 whenever
    reachable, so every store is a full-width unmasked vst."""
    B, D = value.shape
    if D % _LANE == 0:
        return value, mean_row.reshape(1, D), B, D, 0
    L = math.lcm(D, _LANE)
    if (B * D) % L == 0 and L <= 4096:
        # Repack [B, D] -> [(B*D)//L, L]; the mean pattern tiles cleanly.
        rows, W = (B * D) // L, L
        val2 = value.reshape(rows, W)
        mean2 = jnp.tile(mean_row, L // D).reshape(1, W)
        return val2, mean2, rows, W, 0
    # Fallback: pad the feature dim once (lane-dense stores beat vst.msk).
    Dp = _round_up(D, _LANE)
    pad = Dp - D
    val2 = jnp.pad(value, ((0, 0), (0, pad)))
    mean2 = jnp.pad(mean_row, (0, pad)).reshape(1, Dp)
    return val2, mean2, B, Dp, pad


# ----------------------------------------------------------------------------
# Kernel 1: out = value + mean_row  (mean broadcast over rows)
# ----------------------------------------------------------------------------
def _add_bcast_kernel(value_ref, mean_ref, out_ref):
    # value/out: (TR, W); mean: (8, W) resident across the grid (index (0, 0)).
    out_ref[...] = value_ref[...] + mean_ref[0:1, :]


def full_normal_noise_forward(value, mean_param, cov, *, donate_value=False):
    """Return (loc, cov, scale_tril) of MultivariateNormal(loc, cov).

    value:      [B, D]  noise-free values
    mean_param: [D] learnable mean, or None (fixed zero mean)
    cov:        [D, D] learnable full covariance
    """
    B, D = value.shape

    if mean_param is None:
        # train_mean=False / learnable=False: mean is the input itself.
        loc = value
    else:
        itemsize = jnp.dtype(value.dtype).itemsize
        val2, mean_row, rows, W, pad = _lane_dense_layout(
            value, mean_param.astype(value.dtype))
        mean_blk = jnp.broadcast_to(mean_row, (_SUBLANE, W))  # clean (8,128k) tile

        tile_rows = _pick_tile_rows(rows, W * itemsize)
        grid = (pl.cdiv(rows, tile_rows),)
        tile_bytes = tile_rows * W * itemsize

        call_kwargs = {}
        if donate_value and pad == 0:
            # Elementwise: same-index dependence only -> aliasing is safe.
            call_kwargs["input_output_aliases"] = {0: 0}

        loc2 = pl.pallas_call(
            _add_bcast_kernel,
            out_shape=jax.ShapeDtypeStruct((rows, W), value.dtype),
            grid_spec=pltpu.PrefetchScalarGridSpec(
                num_scalar_prefetch=0,
                grid=grid,
                in_specs=[
                    pl.BlockSpec((tile_rows, W), lambda i: (i, 0)),
                    pl.BlockSpec((_SUBLANE, W), lambda i: (0, 0)),  # resident
                ],
                out_specs=pl.BlockSpec((tile_rows, W), lambda i: (i, 0)),
            ),
            compiler_params=pltpu.CompilerParams(
                dimension_semantics=("parallel",),
                vmem_limit_bytes=_vmem_limit(
                    tile_bytes, 2, _SUBLANE * W * itemsize),
            ),
            **call_kwargs,
        )(val2, mean_blk)

        loc = loc2[:, :D] if pad else loc2.reshape(B, D)

    # MultivariateNormal(loc, cov) builds scale_tril = cholesky(cov): tiny (D,D)
    # factorization -> plain JAX glue.
    # NOTE: cholesky returns NaNs (not an error) if cov drifts non-PD during
    # training; the PyTorch module only repairs PD-ness inside adapt().
    scale_tril = jnp.linalg.cholesky(cov)
    return loc, cov, scale_tril


# ----------------------------------------------------------------------------
# Kernel 2 (fused sampling): sample = value [+ mean] + eps @ scale_tril.T
# One HBM pass over value/eps; the tiny (D,D) MXU matmul hides under the
# HBM stream on all generations.
# ----------------------------------------------------------------------------
def _fused_sample_kernel(value_ref, eps_ref, st_t_ref, mean_ref, out_ref):
    noise = jnp.dot(eps_ref[...], st_t_ref[...],
                    preferred_element_type=jnp.float32)
    out_ref[...] = (value_ref[...].astype(jnp.float32)
                    + mean_ref[0:1, :].astype(jnp.float32)
                    + noise).astype(out_ref.dtype)


def full_normal_noise_rsample(value, mean_param, cov, eps):
    """Fused reparameterized sample of the forward()'s MultivariateNormal."""
    B, D = value.shape
    assert eps.shape == (B, D)
    itemsize = jnp.dtype(value.dtype).itemsize

    scale_tril = jnp.linalg.cholesky(cov)
    st_t = scale_tril.T.astype(value.dtype)          # pre-transpose in wrapper
    mean_row = (jnp.zeros((D,), value.dtype) if mean_param is None
                else mean_param.astype(value.dtype))
    mean_blk = jnp.broadcast_to(mean_row.reshape(1, D), (_SUBLANE, D))

    # The matmul needs D intact -> feature axis stays full-extent; batch tiled.
    tile_b = _pick_tile_rows(B, D * itemsize, target_bytes=2 << 20)
    grid = (pl.cdiv(B, tile_b),)
    tile_bytes = tile_b * D * itemsize

    sample = pl.pallas_call(
        _fused_sample_kernel,
        out_shape=jax.ShapeDtypeStruct((B, D), value.dtype),
        grid_spec=pltpu.PrefetchScalarGridSpec(
            num_scalar_prefetch=0,
            grid=grid,
            in_specs=[
                pl.BlockSpec((tile_b, D), lambda i: (i, 0)),        # value
                pl.BlockSpec((tile_b, D), lambda i: (i, 0)),        # eps
                pl.BlockSpec((D, D), lambda i: (0, 0)),             # L^T resident
                pl.BlockSpec((_SUBLANE, D), lambda i: (0, 0)),      # mean resident
            ],
            out_specs=pl.BlockSpec((tile_b, D), lambda i: (i, 0)),
        ),
        compiler_params=pltpu.CompilerParams(
            dimension_semantics=("parallel",),
            vmem_limit_bytes=_vmem_limit(
                tile_bytes, 3, (D * D + _SUBLANE * D) * itemsize),
        ),
    )(value, eps, st_t, mean_blk)
    return sample, scale_tril


# ----------------------------------------------------------------------------
# Deterministic parameter init mirroring FullNormalNoise.__init__ / reset
# ----------------------------------------------------------------------------
def init_full_normal_noise(noise_dim, std_init=1.0, train_mean=True,
                           dtype=jnp.float32):
    cov = (std_init ** 2) * jnp.eye(noise_dim, dtype=dtype)
    mean = jnp.zeros((noise_dim,), dtype=dtype) if train_mean else None
    return mean, cov


if __name__ == "__main__":
    key = jax.random.PRNGKey(0)
    k_val, k_cov, k_eps, k_big = jax.random.split(key, 4)

    # ---- primary demo: B=8, D=32 (lane-dense repack: rows=2, W=128) --------
    B, D = 8, 32
    value = jax.random.normal(k_val, (B, D), dtype=jnp.float32)
    mean_param, cov = init_full_normal_noise(D, std_init=0.5, train_mean=True)
    mean_param = mean_param + 0.01 * jnp.arange(D, dtype=jnp.float32)
    # Perturb cov (keeping it PD) so cholesky / the fused matmul are non-trivial.
    a = 0.05 * jax.random.normal(k_cov, (D, D), dtype=jnp.float32)
    cov = cov + a @ a.T

    loc, cov_out, scale_tril = full_normal_noise_forward(value, mean_param, cov)
    jax.block_until_ready(loc)
    jax.block_until_ready(scale_tril)
    assert not bool(jnp.any(jnp.isnan(scale_tril))), "cov not PD (NaN scale_tril)"
    assert jnp.allclose(loc, value + mean_param[None, :], atol=1e-6), "mean mismatch"
    assert jnp.allclose(scale_tril @ scale_tril.T, cov, atol=1e-4), "cholesky mismatch"

    # mean=None path (train_mean=False): forward returns value unchanged.
    loc_none, _, _ = full_normal_noise_forward(value, None, cov)
    assert jnp.allclose(loc_none, value, atol=0.0), "mean=None path mismatch"

    # ---- fused sampling: value + mean + eps @ L.T in one HBM pass ----------
    eps = jax.random.normal(k_eps, (B, D), dtype=jnp.float32)
    sample, st = full_normal_noise_rsample(value, mean_param, cov, eps)
    jax.block_until_ready(sample)
    sample_ref = value + mean_param[None, :] + eps @ st.T
    assert jnp.allclose(sample, sample_ref, atol=5e-3, rtol=5e-3), "fused sample mismatch"

    # ---- awkward D handled lane-dense via repack to W=lcm(48,128)=384 ------
    B2, D2 = 24, 48
    v2 = jax.random.normal(k_val, (B2, D2), dtype=jnp.float32)
    m2 = 0.01 * jnp.arange(D2, dtype=jnp.float32)
    c2 = 0.36 * jnp.eye(D2, dtype=jnp.float32)
    loc2, _, _ = full_normal_noise_forward(v2, m2, c2)
    assert jnp.allclose(loc2, v2 + m2[None, :], atol=1e-6), "repack path mismatch"

    # ---- awkward D with no clean repack: feature axis padded to 128 --------
    B3, D3 = 10, 24
    v3 = jax.random.normal(k_val, (B3, D3), dtype=jnp.float32)
    m3 = 0.01 * jnp.arange(D3, dtype=jnp.float32)
    c3 = 0.25 * jnp.eye(D3, dtype=jnp.float32)
    loc3, _, _ = full_normal_noise_forward(v3, m3, c3)
    assert jnp.allclose(loc3, v3 + m3[None, :], atol=1e-6), "pad path mismatch"

    # ---- ragged cdiv grid: rows=250, tile=32 -> 8 steps, masked last block -
    B4, D4 = 1000, 32
    v4 = jax.random.normal(k_big, (B4, D4), dtype=jnp.float32)
    m4 = 0.01 * jnp.arange(D4, dtype=jnp.float32)
    c4 = 0.25 * jnp.eye(D4, dtype=jnp.float32)
    loc4, _, _ = full_normal_noise_forward(v4, m4, c4)
    jax.block_until_ready(loc4)
    assert jnp.allclose(loc4, v4 + m4[None, :], atol=1e-6), "ragged grid mismatch"

    print("KERNEL_OK")
</pallas_src>

<mosaic_0001>
module attributes {stable_mosaic.version = 11 : i64} {
  func.func @_add_bcast_kernel(%arg0: i32, %arg1: memref<2x128xf32, #tpu.memory_space<vmem>>, %arg2: memref<8x128xf32, #tpu.memory_space<vmem>>, %arg3: memref<2x128xf32, #tpu.memory_space<vmem>>) attributes {dimension_semantics = [#tpu.dimension_semantics<parallel>], iteration_bounds = array<i64: 1>, scalar_prefetch = 0 : i64, scratch_operands = 0 : i64, tpu.core_type = #tpu.core_type<tc>, window_params = [{transform_indices = @transform_0, window_bounds = array<i64: 2, 128>}, {pipeline_mode = #tpu.pipeline_mode<synchronous>, transform_indices = @transform_1, window_bounds = array<i64: 8, 128>}, {transform_indices = @transform_2, window_bounds = array<i64: 2, 128>}]} {
    %c0 = arith.constant 0 : index
    %c0_0 = arith.constant 0 : index
    %0 = vector.load %arg1[%c0, %c0_0] : memref<2x128xf32, #tpu.memory_space<vmem>>, vector<2x128xf32>
    %c0_1 = arith.constant 0 : index
    %c0_2 = arith.constant 0 : index
    %1 = vector.load %arg2[%c0_1, %c0_2] : memref<8x128xf32, #tpu.memory_space<vmem>>, vector<1x128xf32>
    %2 = vector.broadcast %1 : vector<1x128xf32> to vector<2x128xf32>
    %3 = arith.addf %0, %2 : vector<2x128xf32>
    %c0_3 = arith.constant 0 : index
    %c0_4 = arith.constant 0 : index
    %4 = vector.load %arg3[%c0_3, %c0_4] : memref<2x128xf32, #tpu.memory_space<vmem>>, vector<2x128xf32>
    tpu.vector_store %arg3[%c0_3, %c0_4], %3 {strides = array<i32>} : memref<2x128xf32, #tpu.memory_space<vmem>>, vector<2x128xf32>,
    return
  }
  func.func @transform_0(%arg0: i32) -> (i32, i32) {
    %c0_i32 = arith.constant 0 : i32
    %c0_i32_0 = arith.constant 0 : i32
    return %arg0, %c0_i32 : i32, i32
  }
  func.func @transform_1(%arg0: i32) -> (i32, i32) {
    %c0_i32 = arith.constant 0 : i32
    %c0_i32_0 = arith.constant 0 : i32
    %c0_i32_1 = arith.constant 0 : i32
    return %c0_i32, %c0_i32_0 : i32, i32
  }
  func.func @transform_2(%arg0: i32) -> (i32, i32) {
    %c0_i32 = arith.constant 0 : i32
    %c0_i32_0 = arith.constant 0 : i32
    return %arg0, %c0_i32 : i32, i32
  }
}

</mosaic_0001>

<llo_original>
// kernel: tpu_custom_call.1
$region0: #{tpu_custom_call.1}
  #allocation0 [shape = 'u32[]', space=smem, size = 0x4, offset = 0x4, fixed_abs, tag = 'smem constant byte address 0x4 - core index']
  #allocation1 [shape = 'u32[144,128]{1,0:T(1,128)}', space=vmem, size = 0x12000, scoped, tag = 'internal scratch']
  %s0 = inlined_call_operand.hbm [shape: f32[2,128], index: 0, kind: input, shape index: {}]
  %s1 = inlined_call_operand.hbm [shape: f32[8,128], index: 1, kind: input, shape index: {}]
  %s2 = inlined_call_operand.hbm [shape: f32[2,128], index: 2, kind: output, shape index: {}]
  %s3 = sld [smem:[#allocation0]]
  $region26: #{tpu_custom_call.1} parent=0
    _
  %s5 = ssub.s32 1, %s3
  %s6 = scalar_select 0, %s5, %s3
  $region1: #{tpu_custom_call.1} parent=0
    #allocation2 [shape = 'u8[1024]{0}', space=vmem, size = 0x400, scoped, tag = 'input window, operand 0, single buffered']
    #allocation3 [shape = 's32[1]{0}', space=sflag, size = 0x4, scoped, tag = 'scoped memory for tpu_custom_call.1']
    #allocation4 [shape = 's32[1]{0}', space=sflag, size = 0x4, scoped, tag = 'scoped memory for tpu_custom_call.1']
    #allocation5 [shape = 'u8[4096]{0}', space=vmem, size = 0x1000, scoped, tag = 'input window, operand 1, single buffered']
    #allocation6 [shape = 's32[1]{0}', space=sflag, size = 0x4, scoped, tag = 'scoped memory for tpu_custom_call.1']
    #allocation7 [shape = 'u8[1024]{0}', space=vmem, size = 0x400, scoped, tag = 'output window, operand 0, single buffered']
    %7 = vsyncpa [#allocation3], 0
    %8 = vsyncpa [#allocation6], 0
    %9 = vsyncpa [#allocation4], 0
    // Predicated region
    $region2: #{tpu_custom_call.1} parent=1 // pred_check
      _
    $region3: #{tpu_custom_call.1} parent=1 // pred_check_branch
      %11 = sbr.rel (0) target = $region5
    $region4: #{tpu_custom_call.1} parent=1 // pred_region
      %s13 = ssub.s32 32, 32
      %14 = vsyncadd [#allocation3], %s13
      %s16 = sshll.u32 [#allocation2], 4
      %s17 = int_to_ptr.vmem [resolvable:$true] %s16
      %19 = dma.hbm_to_vmem [thread:$0]  %s0, 32, %s17, [#allocation3]
    $region5: #{tpu_custom_call.1} parent=1 // pred_fallthru
      _
    // Predicated region
    $region6: #{tpu_custom_call.1} parent=1 // pred_check
      _
    $region7: #{tpu_custom_call.1} parent=1 // pred_check_branch
      %21 = sbr.rel (0) target = $region9
    $region8: #{tpu_custom_call.1} parent=1 // pred_region
      %s23 = ssub.s32 128, 128
      %24 = vsyncadd [#allocation6], %s23
      %s26 = sshll.u32 [#allocation5], 4
      %s27 = int_to_ptr.vmem [resolvable:$true] %s26
      %29 = dma.hbm_to_vmem [thread:$0]  %s1, 128, %s27, [#allocation6]
    $region9: #{tpu_custom_call.1} parent=1 // pred_fallthru
      _
    // Predicated region
    $region10: #{tpu_custom_call.1} parent=1 // pred_check
      _
    $region11: #{tpu_custom_call.1} parent=1 // pred_check_branch
      %31 = sbr.rel (0) target = $region13
    $region12: #{tpu_custom_call.1} parent=1 // pred_region
      %32 = dma.done [#allocation3], 32
    $region13: #{tpu_custom_call.1} parent=1 // pred_fallthru
      _
    // Predicated region
    $region14: #{tpu_custom_call.1} parent=1 // pred_check
      _
    $region15: #{tpu_custom_call.1} parent=1 // pred_check_branch
      %34 = sbr.rel (0) target = $region17
    $region16: #{tpu_custom_call.1} parent=1 // pred_region
      %35 = dma.done [#allocation6], 128
    $region17: #{tpu_custom_call.1} parent=1 // pred_fallthru
      _
    %v36 = vld [vmem:[#allocation2] sm:$0x3]
    %v37 = vld [vmem:[#allocation5] sm:$0x1]
    %v38 = vlaneseq
    %v39 = vshrl.u32 %v38, 7
    %v40 = vsub.s32 0, %v39
    %v41 = vrot.slane %v37, %v40
    %v42 = vadd.f32 %v36, %v41
    %43 = vst [vmem:[#allocation7] sm:$0x3] %v42
    // Predicated region
    $region18: #{tpu_custom_call.1} parent=1 // pred_check
      _
    $region19: #{tpu_custom_call.1} parent=1 // pred_check_branch
      %45 = sbr.rel (0) target = $region21
    $region20: #{tpu_custom_call.1} parent=1 // pred_region
      %s47 = ssub.s32 32, 32
      %48 = vsyncadd [#allocation4], %s47
      %s50 = sshll.u32 [#allocation7], 4
      %s51 = int_to_ptr.vmem [resolvable:$true] %s50
      %53 = dma.vmem_to_hbm [thread:$0]  %s51, 32, %s2, [#allocation4]
    $region21: #{tpu_custom_call.1} parent=1 // pred_fallthru
      _
    // Predicated region
    $region22: #{tpu_custom_call.1} parent=1 // pred_check
      _
    $region23: #{tpu_custom_call.1} parent=1 // pred_check_branch
      %55 = sbr.rel (0) target = $region25
    $region24: #{tpu_custom_call.1} parent=1 // pred_region
      %56 = dma.done [#allocation4], 32
    $region25: #{tpu_custom_call.1} parent=1 // pred_fallthru
      _
    %57 = vsyncpa [#allocation3], 1
    %58 = vsyncpa [#allocation6], 1
    %59 = vsyncpa [#allocation4], 1

</llo_original>
